<compile_context>
chip_gen: v6e
topology: v6e:2x2x1
jax: 0.10.0
libtpu: 0.0.40
codegen_flags: <defaults>
</compile_context>

<pallas_src>
import jax
import jax.numpy as jnp
import numpy as np
from jax.experimental import pallas as pl
from jax.experimental.pallas import tpu as pltpu  # noqa: F401  (TPU backend)

REPEATS = 32          # 8 loop iterations x 4 appends in the PyTorch module
B, M, K, N = 3, 4, 5, 3
BM = B * M            # 12
RN = REPEATS * N      # 96
BM_PAD = 16           # 12 -> 16 sublanes  (two full (8,128) vregs)
RN_PAD = 128          # 96 -> 128 lanes    (unmasked dense vst)


def _mm_rep_kernel(x1_ref, x2_ref, o_ref):
    # x1_ref: (BM, K)  = (12, 5)    raw activations
    # x2_ref: (K, N)   = (5, 3)     raw, untiled weight (60 B DMA)
    # o_ref:  (BM_PAD, RN_PAD) = (16, 128)  lane+sublane dense output slab
    x1 = x1_ref[...]
    x2 = x2_ref[...]

    # K=5: MXU would be <0.1% utilized, so use 5 VPU broadcast-FMAs instead.
    acc = x1[:, 0:1] * x2[0:1, :]                 # (12, 3)
    for k in range(1, K):
        acc = acc + x1[:, k : k + 1] * x2[k : k + 1, :]

    # Fold the 32-way torch.cat(dim=2) into a lane replication of the single
    # (12, 3) result, then pad lanes 96->128 and sublanes 12->16 so the write
    # is one unmasked (16, 128) store (no vst.msk partial stores).
    lane_pad = jnp.zeros((BM, RN_PAD - RN), jnp.float32)          # (12, 32)
    row = jnp.concatenate([acc] * REPEATS + [lane_pad], axis=1)   # (12, 128)
    sub_pad = jnp.zeros((BM_PAD - BM, RN_PAD), jnp.float32)       # (4, 128)
    o_ref[...] = jnp.concatenate([row, sub_pad], axis=0)          # (16, 128)


def model_forward(x1: jax.Array, x2: jax.Array) -> jax.Array:
    b, m, k = x1.shape
    k2, n = x2.shape
    assert (b, m, k) == (B, M, K) and (k2, n) == (K, N)

    x1_2d = x1.reshape(BM, K)

    cost = pl.CostEstimate(
        flops=2 * BM * K * N,
        transcendentals=0,
        bytes_accessed=(BM * K + K * N + BM_PAD * RN_PAD) * 4,
    )

    out_pad = pl.pallas_call(
        _mm_rep_kernel,
        out_shape=jax.ShapeDtypeStruct((BM_PAD, RN_PAD), jnp.float32),
        in_specs=[
            pl.BlockSpec((BM, K), lambda: (0, 0)),   # full-array block (12, 5)
            pl.BlockSpec((K, N), lambda: (0, 0)),    # full-array block (5, 3)
        ],
        out_specs=pl.BlockSpec((BM_PAD, RN_PAD), lambda: (0, 0)),
        cost_estimate=cost,
    )(x1_2d, x2)

    # Strip the padding and restore the module's (B, M, 32*N) output layout.
    return out_pad[:BM, :RN].reshape(B, M, RN)


if __name__ == "__main__":
    key = jax.random.PRNGKey(0)
    k1, k2 = jax.random.split(key)
    # Shapes implied by the module: x1 = randn(3, 4, 5), x2 = randn(5, 3)
    x1 = jax.random.normal(k1, (3, 4, 5), dtype=jnp.float32)
    x2 = jax.random.normal(k2, (5, 3), dtype=jnp.float32)

    out = model_forward(x1, x2)
    out = jax.block_until_ready(out)

    # Reference check in plain JAX (same semantics as the PyTorch forward).
    ref_single = jnp.einsum("bmk,kn->bmn", x1, x2)
    ref = jnp.concatenate([ref_single] * REPEATS, axis=2)
    np.testing.assert_allclose(np.asarray(out), np.asarray(ref), rtol=1e-5, atol=1e-5)
    assert out.shape == (3, 4, 96)

    print("KERNEL_OK")
</pallas_src>

<mosaic_0001>
module attributes {stable_mosaic.version = 11 : i64} {
  func.func @_mm_rep_kernel(%arg0: memref<12x5xf32, #tpu.memory_space<vmem>>, %arg1: memref<5x3xf32, #tpu.memory_space<vmem>>, %arg2: memref<16x128xf32, #tpu.memory_space<vmem>>) attributes {dimension_semantics = [], scalar_prefetch = 0 : i64, scratch_operands = 0 : i64, tpu.core_type = #tpu.core_type<tc>} {
    %c0 = arith.constant 0 : index
    %c0_0 = arith.constant 0 : index
    %0 = vector.load %arg0[%c0, %c0_0] : memref<12x5xf32, #tpu.memory_space<vmem>>, vector<12x5xf32>
    %c0_1 = arith.constant 0 : index
    %c0_2 = arith.constant 0 : index
    %1 = vector.load %arg1[%c0_1, %c0_2] : memref<5x3xf32, #tpu.memory_space<vmem>>, vector<5x3xf32>
    %2 = vector.extract_strided_slice %0 {offsets = [0, 0], sizes = [12, 1], strides = [1, 1]} : vector<12x5xf32> to vector<12x1xf32>
    %3 = vector.extract_strided_slice %1 {offsets = [0, 0], sizes = [1, 3], strides = [1, 1]} : vector<5x3xf32> to vector<1x3xf32>
    %4 = vector.broadcast %2 : vector<12x1xf32> to vector<12x3xf32>
    %5 = vector.broadcast %3 : vector<1x3xf32> to vector<12x3xf32>
    %6 = arith.mulf %4, %5 : vector<12x3xf32>
    %7 = vector.extract_strided_slice %0 {offsets = [0, 1], sizes = [12, 1], strides = [1, 1]} : vector<12x5xf32> to vector<12x1xf32>
    %8 = vector.extract_strided_slice %1 {offsets = [1, 0], sizes = [1, 3], strides = [1, 1]} : vector<5x3xf32> to vector<1x3xf32>
    %9 = vector.broadcast %7 : vector<12x1xf32> to vector<12x3xf32>
    %10 = vector.broadcast %8 : vector<1x3xf32> to vector<12x3xf32>
    %11 = arith.mulf %9, %10 : vector<12x3xf32>
    %12 = arith.addf %6, %11 : vector<12x3xf32>
    %13 = vector.extract_strided_slice %0 {offsets = [0, 2], sizes = [12, 1], strides = [1, 1]} : vector<12x5xf32> to vector<12x1xf32>
    %14 = vector.extract_strided_slice %1 {offsets = [2, 0], sizes = [1, 3], strides = [1, 1]} : vector<5x3xf32> to vector<1x3xf32>
    %15 = vector.broadcast %13 : vector<12x1xf32> to vector<12x3xf32>
    %16 = vector.broadcast %14 : vector<1x3xf32> to vector<12x3xf32>
    %17 = arith.mulf %15, %16 : vector<12x3xf32>
    %18 = arith.addf %12, %17 : vector<12x3xf32>
    %19 = vector.extract_strided_slice %0 {offsets = [0, 3], sizes = [12, 1], strides = [1, 1]} : vector<12x5xf32> to vector<12x1xf32>
    %20 = vector.extract_strided_slice %1 {offsets = [3, 0], sizes = [1, 3], strides = [1, 1]} : vector<5x3xf32> to vector<1x3xf32>
    %21 = vector.broadcast %19 : vector<12x1xf32> to vector<12x3xf32>
    %22 = vector.broadcast %20 : vector<1x3xf32> to vector<12x3xf32>
    %23 = arith.mulf %21, %22 : vector<12x3xf32>
    %24 = arith.addf %18, %23 : vector<12x3xf32>
    %25 = vector.extract_strided_slice %0 {offsets = [0, 4], sizes = [12, 1], strides = [1, 1]} : vector<12x5xf32> to vector<12x1xf32>
    %26 = vector.extract_strided_slice %1 {offsets = [4, 0], sizes = [1, 3], strides = [1, 1]} : vector<5x3xf32> to vector<1x3xf32>
    %27 = vector.broadcast %25 : vector<12x1xf32> to vector<12x3xf32>
    %28 = vector.broadcast %26 : vector<1x3xf32> to vector<12x3xf32>
    %29 = arith.mulf %27, %28 : vector<12x3xf32>
    %30 = arith.addf %24, %29 : vector<12x3xf32>
    %cst = arith.constant 0.000000e+00 : f32
    %31 = vector.broadcast %cst : f32 to vector<12x32xf32>
    %32 = tpu.concatenate %30, %30, %30, %30, %30, %30, %30, %30, %30, %30, %30, %30, %30, %30, %30, %30 in 1 : vector<12x3xf32>, vector<12x3xf32>, vector<12x3xf32>, vector<12x3xf32>, vector<12x3xf32>, vector<12x3xf32>, vector<12x3xf32>, vector<12x3xf32>, vector<12x3xf32>, vector<12x3xf32>, vector<12x3xf32>, vector<12x3xf32>, vector<12x3xf32>, vector<12x3xf32>, vector<12x3xf32>, vector<12x3xf32> -> vector<12x48xf32>
    %33 = tpu.concatenate %30, %30, %30, %30, %30, %30, %30, %30, %30, %30, %30, %30, %30, %30, %30, %30 in 1 : vector<12x3xf32>, vector<12x3xf32>, vector<12x3xf32>, vector<12x3xf32>, vector<12x3xf32>, vector<12x3xf32>, vector<12x3xf32>, vector<12x3xf32>, vector<12x3xf32>, vector<12x3xf32>, vector<12x3xf32>, vector<12x3xf32>, vector<12x3xf32>, vector<12x3xf32>, vector<12x3xf32>, vector<12x3xf32> -> vector<12x48xf32>
    %34 = tpu.concatenate %32, %33, %31 in 1 : vector<12x48xf32>, vector<12x48xf32>, vector<12x32xf32> -> vector<12x128xf32>
    %cst_3 = arith.constant 0.000000e+00 : f32
    %35 = vector.broadcast %cst_3 : f32 to vector<4x128xf32>
    %36 = tpu.concatenate %34, %35 in 0 : vector<12x128xf32>, vector<4x128xf32> -> vector<16x128xf32>
    %c0_4 = arith.constant 0 : index
    %c0_5 = arith.constant 0 : index
    %37 = vector.load %arg2[%c0_4, %c0_5] : memref<16x128xf32, #tpu.memory_space<vmem>>, vector<16x128xf32>
    tpu.vector_store %arg2[%c0_4, %c0_5], %36 {strides = array<i32>} : memref<16x128xf32, #tpu.memory_space<vmem>>, vector<16x128xf32>,
    return
  }
}

</mosaic_0001>

<llo_original>
// kernel: tpu_custom_call.1
$region0: #{tpu_custom_call.1}
  #allocation0 [shape = 'u32[]', space=smem, size = 0x4, offset = 0x4, fixed_abs, tag = 'smem constant byte address 0x4 - core index']
  #allocation1 [shape = 'u32[144,128]{1,0:T(1,128)}', space=vmem, size = 0x12000, scoped, tag = 'internal scratch']
  %s0 = inlined_call_operand.vmem [shape: f32[12,5], index: 0, kind: input, shape index: {}]
  %s1 = inlined_call_operand.vmem [shape: f32[5,3], index: 1, kind: input, shape index: {}]
  %s2 = inlined_call_operand.hbm [shape: f32[16,128], index: 2, kind: output, shape index: {}]
  %s3 = sld [smem:[#allocation0]]
  $region18: #{tpu_custom_call.1} parent=0
    _
  %s5 = ssub.s32 1, %s3
  %s6 = scalar_select 0, %s5, %s3
  $region1: #{tpu_custom_call.1} parent=0
    #allocation2 [shape = 'u8[8192]{0}', space=vmem, size = 0x2000, scoped, tag = 'output window, operand 0, single buffered']
    #allocation3 [shape = 's32[1]{0}', space=sflag, size = 0x4, scoped, tag = 'scoped memory for tpu_custom_call.1']
    %7 = vsyncpa [#allocation3], 0
    // Predicated region
    $region2: #{tpu_custom_call.1} parent=1 // pred_check
      _
    $region3: #{tpu_custom_call.1} parent=1 // pred_check_branch
      %9 = sbr.rel (0) target = $region5
    $region4: #{tpu_custom_call.1} parent=1 // pred_region
      _
    $region5: #{tpu_custom_call.1} parent=1 // pred_fallthru
      _
    // Predicated region
    $region6: #{tpu_custom_call.1} parent=1 // pred_check
      _
    $region7: #{tpu_custom_call.1} parent=1 // pred_check_branch
      %11 = sbr.rel (0) target = $region9
    $region8: #{tpu_custom_call.1} parent=1 // pred_region
      _
    $region9: #{tpu_custom_call.1} parent=1 // pred_fallthru
      _
    %v12 = vld [vmem:[%s0] sm:$0xff]
    %v13 = vld [vmem:[%s0 + $0x8] sm:$0xf]
    %v14 = vld [vmem:[%s1] sm:$0x1f]
    %16 = vset.pattern.permute.xlu0 0
    %17 = vperm.xlu0 %16, %v12
    %v18 = vpop.permute.xlu0 %17
    %21 = vset.pattern.permute.xlu0 0
    %22 = vperm.xlu0 %21, %v13
    %v23 = vpop.permute.xlu0 %22
    %v25 = vlaneseq
    %v26 = vshrl.u32 %v25, 7
    %v27 = vsub.s32 0, %v26
    %v28 = vrot.slane %v14, %v27
    %v29 = vmul.f32 %v18, %v28
    %v30 = vmul.f32 %v23, %v28
    %31 = vset.pattern.permute.xlu0 1
    %32 = vperm.xlu0 %31, %v12
    %v33 = vpop.permute.xlu0 %32
    %35 = vset.pattern.permute.xlu0 1
    %36 = vperm.xlu0 %35, %v13
    %v37 = vpop.permute.xlu0 %36
    %v39 = vlaneseq
    %v40 = vshrl.u32 %v39, 7
    %v41 = vsub.s32 1, %v40
    %v42 = vrot.slane %v14, %v41
    %v43 = vmul.f32 %v33, %v42
    %v44 = vmul.f32 %v37, %v42
    %v45 = vadd.f32 %v29, %v43
    %v46 = vadd.f32 %v30, %v44
    %47 = vset.pattern.permute.xlu0 2
    %48 = vperm.xlu0 %47, %v12
    %v49 = vpop.permute.xlu0 %48
    %51 = vset.pattern.permute.xlu0 2
    %52 = vperm.xlu0 %51, %v13
    %v53 = vpop.permute.xlu0 %52
    %v55 = vlaneseq
    %v56 = vshrl.u32 %v55, 7
    %v57 = vsub.s32 2, %v56
    %v58 = vrot.slane %v14, %v57
    %v59 = vmul.f32 %v49, %v58
    %v60 = vmul.f32 %v53, %v58
    %v61 = vadd.f32 %v45, %v59
    %v62 = vadd.f32 %v46, %v60
    %63 = vset.pattern.permute.xlu0 3
    %64 = vperm.xlu0 %63, %v12
    %v65 = vpop.permute.xlu0 %64
    %67 = vset.pattern.permute.xlu0 3
    %68 = vperm.xlu0 %67, %v13
    %v69 = vpop.permute.xlu0 %68
    %v71 = vlaneseq
    %v72 = vshrl.u32 %v71, 7
    %v73 = vsub.s32 3, %v72
    %v74 = vrot.slane %v14, %v73
    %v75 = vmul.f32 %v65, %v74
    %v76 = vmul.f32 %v69, %v74
    %v77 = vadd.f32 %v61, %v75
    %v78 = vadd.f32 %v62, %v76
    %79 = vset.pattern.permute.xlu0 4
    %80 = vperm.xlu0 %79, %v12
    %v81 = vpop.permute.xlu0 %80
    %83 = vset.pattern.permute.xlu0 4
    %84 = vperm.xlu0 %83, %v13
    %v85 = vpop.permute.xlu0 %84
    %v87 = vlaneseq
    %v88 = vshrl.u32 %v87, 7
    %v89 = vsub.s32 4, %v88
    %v90 = vrot.slane %v14, %v89
    %v91 = vmul.f32 %v81, %v90
    %v92 = vmul.f32 %v85, %v90
    %v93 = vadd.f32 %v77, %v91
    %v94 = vadd.f32 %v78, %v92
    %97 = vrot.lane.b32.xlu0 %v93, 3
    %v98 = vpop.permute.xlu0 %97
    %99 = vrot.lane.b32.xlu0 %v94, 3
    %v100 = vpop.permute.xlu0 %99
    %103 = vrot.lane.b32.xlu0 %v93, 6
    %v104 = vpop.permute.xlu0 %103
    %105 = vrot.lane.b32.xlu0 %v94, 6
    %v106 = vpop.permute.xlu0 %105
    %109 = vrot.lane.b32.xlu0 %v93, 9
    %v110 = vpop.permute.xlu0 %109
    %111 = vrot.lane.b32.xlu0 %v94, 9
    %v112 = vpop.permute.xlu0 %111
    %115 = vrot.lane.b32.xlu0 %v93, 12
    %v116 = vpop.permute.xlu0 %115
    %117 = vrot.lane.b32.xlu0 %v94, 12
    %v118 = vpop.permute.xlu0 %117
    %121 = vrot.lane.b32.xlu0 %v93, 15
    %v122 = vpop.permute.xlu0 %121
    %123 = vrot.lane.b32.xlu0 %v94, 15
    %v124 = vpop.permute.xlu0 %123
    %127 = vrot.lane.b32.xlu0 %v93, 18
    %v128 = vpop.permute.xlu0 %127
    %129 = vrot.lane.b32.xlu0 %v94, 18
    %v130 = vpop.permute.xlu0 %129
    %133 = vrot.lane.b32.xlu0 %v93, 21
    %v134 = vpop.permute.xlu0 %133
    %135 = vrot.lane.b32.xlu0 %v94, 21
    %v136 = vpop.permute.xlu0 %135
    %139 = vrot.lane.b32.xlu0 %v93, 24
    %v140 = vpop.permute.xlu0 %139
    %141 = vrot.lane.b32.xlu0 %v94, 24
    %v142 = vpop.permute.xlu0 %141
    %145 = vrot.lane.b32.xlu0 %v93, 27
    %v146 = vpop.permute.xlu0 %145
    %147 = vrot.lane.b32.xlu0 %v94, 27
    %v148 = vpop.permute.xlu0 %147
    %151 = vrot.lane.b32.xlu0 %v93, 30
    %v152 = vpop.permute.xlu0 %151
    %153 = vrot.lane.b32.xlu0 %v94, 30
    %v154 = vpop.permute.xlu0 %153
    %157 = vrot.lane.b32.xlu0 %v93, 33
    %v158 = vpop.permute.xlu0 %157
    %159 = vrot.lane.b32.xlu0 %v94, 33
    %v160 = vpop.permute.xlu0 %159
    %163 = vrot.lane.b32.xlu0 %v93, 36
    %v164 = vpop.permute.xlu0 %163
    %165 = vrot.lane.b32.xlu0 %v94, 36
    %v166 = vpop.permute.xlu0 %165
    %169 = vrot.lane.b32.xlu0 %v93, 39
    %v170 = vpop.permute.xlu0 %169
    %171 = vrot.lane.b32.xlu0 %v94, 39
    %v172 = vpop.permute.xlu0 %171
    %175 = vrot.lane.b32.xlu0 %v93, 42
    %v176 = vpop.permute.xlu0 %175
    %177 = vrot.lane.b32.xlu0 %v94, 42
    %v178 = vpop.permute.xlu0 %177
    %181 = vrot.lane.b32.xlu0 %v93, 45
    %v182 = vpop.permute.xlu0 %181
    %183 = vrot.lane.b32.xlu0 %v94, 45
    %v184 = vpop.permute.xlu0 %183
    %vm187 = vcmask 23552
    %v188 = vsel %vm187, %v93, %v98
    %v189 = vsel %vm187, %v94, %v100
    %vm190 = vcmask 48128
    %v191 = vsel %vm190, %v188, %v104
    %v192 = vsel %vm190, %v189, %v106
    %vm193 = vcmask 72704
    %v194 = vsel %vm193, %v191, %v110
    %v195 = vsel %vm193, %v192, %v112
    %vm196 = vcmask 97280
    %v197 = vsel %vm196, %v194, %v116
    %v198 = vsel %vm196, %v195, %v118
    %vm199 = vcmask 121856
    %v200 = vsel %vm199, %v197, %v122
    %v201 = vsel %vm199, %v198, %v124
    %vm202 = vcmask 146432
    %v203 = vsel %vm202, %v200, %v128
    %v204 = vsel %vm202, %v201, %v130
    %vm205 = vcmask 171008
    %v206 = vsel %vm205, %v203, %v134
    %v207 = vsel %vm205, %v204, %v136
    %vm208 = vcmask 195584
    %v209 = vsel %vm208, %v206, %v140
    %v210 = vsel %vm208, %v207, %v142
    %vm211 = vcmask 220160
    %v212 = vsel %vm211, %v209, %v146
    %v213 = vsel %vm211, %v210, %v148
    %vm214 = vcmask 244736
    %v215 = vsel %vm214, %v212, %v152
    %v216 = vsel %vm214, %v213, %v154
    %vm217 = vcmask 269312
    %v218 = vsel %vm217, %v215, %v158
    %v219 = vsel %vm217, %v216, %v160
    %vm220 = vcmask 293888
    %v221 = vsel %vm220, %v218, %v164
    %v222 = vsel %vm220, %v219, %v166
    %vm223 = vcmask 318464
    %v224 = vsel %vm223, %v221, %v170
    %v225 = vsel %vm223, %v222, %v172
    %vm226 = vcmask 343040
    %v227 = vsel %vm226, %v224, %v176
    %v228 = vsel %vm226, %v225, %v178
    %vm229 = vcmask 367616
    %v230 = vsel %vm229, %v227, %v182
    %v231 = vsel %vm229, %v228, %v184
    %234 = vrot.lane.b32.xlu0 %v230, 48
    %v235 = vpop.permute.xlu0 %234
    %236 = vrot.lane.b32.xlu0 %v231, 48
    %v237 = vpop.permute.xlu0 %236
    %vm240 = vcmask 392192
    %v241 = vsel %vm240, %v230, %v235
    %v242 = vsel %vm240, %v231, %v237
    %vm243 = vcmask 785408
    %v244 = vsel %vm243, %v241, 0.0
    %v245 = vsel %vm243, %v242, 0.0
    %vm246 = vcmask 1043456
    %v247 = vsel %vm246, %v245, 0.0
    %248 = vst [vmem:[#allocation2] sm:$0xff] %v244
    %249 = vst [vmem:[#allocation2 + $0x8] sm:$0xff] %v247
    // Predicated region
    $region10: #{tpu_custom_call.1} parent=1 // pred_check
      _
    $region11: #{tpu_custom_call.1} parent=1 // pred_check_branch
      %251 = sbr.rel (0) target = $region13
    $region12: #{tpu_custom_call.1} parent=1 // pred_region
      %s253 = ssub.s32 256, 256
      %254 = vsyncadd [#allocation3], %s253
      %s255 = sshll.u32 [#allocation2], 4
      %s256 = int_to_ptr.vmem [resolvable:$true] %s255
      %261 = dma.vmem_to_hbm [thread:$0]  %s256, 256, %s2, [#allocation3], 128, 128, 8
    $region13: #{tpu_custom_call.1} parent=1 // pred_fallthru
      _
    // Predicated region
    $region14: #{tpu_custom_call.1} parent=1 // pred_check
      _
    $region15: #{tpu_custom_call.1} parent=1 // pred_check_branch
      %263 = sbr.rel (0) target = $region17
    $region16: #{tpu_custom_call.1} parent=1 // pred_region
      %264 = dma.done [#allocation3], 256
    $region17: #{tpu_custom_call.1} parent=1 // pred_fallthru
      _
    %265 = vsyncpa [#allocation3], 1

</llo_original>
